<compile_context>
chip_gen: v7x
topology: tpu7x:2x2x1
jax: 0.10.0
libtpu: 0.0.40
codegen_flags: <defaults>
</compile_context>

<pallas_src>
import functools
import math

import jax
import jax.numpy as jnp
import numpy as np
from jax import lax
from jax.experimental import pallas as pl
from jax.experimental.pallas import tpu as pltpu


# ----------------------------------------------------------------------------
# helpers (glue, pure JAX)
# ----------------------------------------------------------------------------
def _square_distance(src, dst):
    """src: (B, N, 3), dst: (B, M, 3) -> (B, N, M) squared distances."""
    d = -2.0 * jnp.einsum("bnc,bmc->bnm", src, dst)
    d = d + jnp.sum(src * src, axis=-1)[:, :, None]
    d = d + jnp.sum(dst * dst, axis=-1)[:, None, :]
    return d


# ----------------------------------------------------------------------------
# Pallas kernel: fused region attention, group-mean, batch folded into block
# ----------------------------------------------------------------------------
def region_attention_pallas(cf_perm, wk, wq, wv, wo, bo, *,
                            num_chunks=2, mxu_dtype=jnp.float32):
    """cf_perm: (B, m, S, C) gathered region features.
    wk/wq/wv/wo: (C_out, C_in) 1x1-conv weights, bo: (C,) outconv bias.
    Returns (B, S, C) = mean over groups of (outconv(attn_out) + cf_g).
    """
    B, m, S, C = cf_perm.shape
    assert S % 8 == 0, "S must be a multiple of 8 for layout-preserving reshapes"

    # Split m into GM chunks -> the grid's parallel axis (>=2 iterations keeps
    # the second TensorCore busy on v7x; on single-TC chips it's just 2 steps).
    GM = num_chunks if (num_chunks > 1 and m % num_chunks == 0) else 1
    mg = m // GM
    G = B * mg                      # attention groups handled per grid step
    scale = 1.0 / math.sqrt(S * C)

    # K @ Q^T == cf @ (Wk^T Wq) @ cf^T: pre-combine the k/q projections into a
    # single (C, C) matrix A and fuse it with the v projection: (C, 2C)=[A|Wv^T].
    a_mat = jnp.dot(wk.T, wq)                                        # (C, C)
    wav = jnp.concatenate([a_mat, wv.T], axis=1).astype(mxu_dtype)   # (C, 2C)
    wo_t = wo.T.astype(mxu_dtype)                                    # (C, C)

    def kernel(cf_ref, wav_ref, wo_ref, out_ref):
        cast = lambda t: t.astype(mxu_dtype)    # no-op for the f32 default
        cf = cf_ref[...]                        # (B, mg, S, C) f32
        cf_g = cf.reshape(G, S, C)              # layout-preserving (S % 8 == 0)
        cf2 = cf.reshape(G * S, C)

        # fused [A | Wv^T] projection: one MXU push, G*S (=128 here) rows
        cav = jnp.dot(cast(cf2), wav_ref[...],
                      preferred_element_type=jnp.float32)            # (G*S, 2C)
        cav = cav.reshape(G, S, 2 * C)
        ca = cav[..., :C]                       # cf @ A
        v = cav[..., C:]                        # cf @ Wv^T

        # logits: (cf @ A) contracted against cf, batched over the G groups
        att = lax.dot_general(
            cast(ca), cast(cf_g),
            dimension_numbers=(((2,), (2,)), ((0,), (0,))),
            preferred_element_type=jnp.float32) * scale              # (G, S, S)
        att = att - jnp.max(att, axis=-1, keepdims=True)
        p = jnp.exp(att)
        p = p / jnp.sum(p, axis=-1, keepdims=True)                   # exact softmax

        o = lax.dot_general(
            cast(p), cast(v),
            dimension_numbers=(((2,), (1,)), ((0,), (0,))),
            preferred_element_type=jnp.float32)                      # (G, S, C)

        # Per-chunk partial with outconv hoisted out of the group sum:
        #   sum_g (o_g @ Wo^T + cf_g) = (sum_g o_g) @ Wo^T + sum_g cf_g
        # (bias and 1/m are added once, in the wrapper).
        o_sum = o.reshape(B, mg, S, C).sum(axis=1)                   # (B, S, C)
        cf_sum = cf.sum(axis=1)                                      # (B, S, C)
        part = jnp.dot(cast(o_sum.reshape(B * S, C)), wo_ref[...],
                       preferred_element_type=jnp.float32).reshape(B, S, C)
        out_ref[0] = part + cf_sum

    flops = (2 * B * m * S * C * (2 * C + 2 * S)     # fused proj + logits + p@v
             + 2 * GM * B * S * C * C)               # per-chunk outconv
    transcendentals = B * m * S * (S + 1)            # exp + row reciprocal
    bytes_accessed = 4 * (B * m * S * C + 3 * C * C + GM * B * S * C)

    partial = pl.pallas_call(
        kernel,
        out_shape=jax.ShapeDtypeStruct((GM, B, S, C), jnp.float32),
        grid_spec=pltpu.PrefetchScalarGridSpec(
            num_scalar_prefetch=0,
            grid=(GM,),
            in_specs=[
                pl.BlockSpec((B, mg, S, C), lambda g: (0, g, 0, 0)),
                pl.BlockSpec((C, 2 * C), lambda g: (0, 0)),
                pl.BlockSpec((C, C), lambda g: (0, 0)),
            ],
            out_specs=pl.BlockSpec((1, B, S, C), lambda g: (g, 0, 0, 0)),
        ),
        compiler_params=pltpu.CompilerParams(
            dimension_semantics=("parallel",),
            vmem_limit_bytes=32 * 1024 * 1024),
        cost_estimate=pl.CostEstimate(
            flops=flops,
            transcendentals=transcendentals,
            bytes_accessed=bytes_accessed),
    )(cf_perm, wav, wo_t)

    # tiny final combine (fuses into the surrounding jit): mean over groups + bias
    return partial.sum(axis=0) * (1.0 / m) + bo[None, None, :]


def region_attention_ref(cf_perm, wk, wq, wv, wo, bo):
    """Pure-JAX reference (mirrors the PyTorch region_relation math)."""
    B, m, S, C = cf_perm.shape
    k = jnp.einsum("bgsc,oc->bgso", cf_perm, wk)
    q = jnp.einsum("bgsc,oc->bgso", cf_perm, wq)
    v = jnp.einsum("bgsc,oc->bgso", cf_perm, wv)
    att = jnp.einsum("bgsc,bgtc->bgst", k, q) / math.sqrt(S * C)
    att = jax.nn.softmax(att, axis=-1)
    o = jnp.einsum("bgst,bgtc->bgsc", att, v)
    o = jnp.einsum("bgsc,oc->bgso", o, wo) + bo
    return jnp.mean(o + cf_perm, axis=1)                      # (B, S, C)


# ----------------------------------------------------------------------------
# IRL forward
# ----------------------------------------------------------------------------
def irl_forward(params, x, xyz, lfe_idx, sample_ratio, m,
                attn_fn=region_attention_pallas):
    """x: (B, C, N) feature; xyz: (B, 3, N) coords. Returns (B, C, N)."""
    B, C, N = x.shape
    S = N // sample_ratio
    del lfe_idx  # only consumed by DRP, see TODO below

    # -------- sample_rep_points --------
    # TODO(synk): DRP submodule definition is not provided in the reference;
    # replaced with deterministic stride sampling for center indices and a
    # sigmoid feature-energy attention score.
    center_index = jnp.broadcast_to(
        jnp.arange(S, dtype=jnp.int32) * sample_ratio, (B, S))
    att_score = jax.nn.sigmoid(jnp.mean(x, axis=1))            # (B, N)

    xyz_t = jnp.transpose(xyz, (0, 2, 1))                      # (B, N, 3)
    center_xyz = jnp.take_along_axis(
        xyz_t, jnp.broadcast_to(center_index[:, :, None], (B, S, 3)), axis=1)
    center_to_all = _square_distance(center_xyz, xyz_t)        # (B, S, N)
    # m nearest points per center (torch.topk(largest=False) equivalent);
    # top_k of m << N is far cheaper than the previous full argsort.
    _, rep_points_idx = jax.lax.top_k(-center_to_all, m)       # (B, S, m)

    idx2 = jnp.broadcast_to(rep_points_idx[:, :, :1], (B, S, 3))
    representative_xyz = jnp.take_along_axis(xyz_t, idx2, axis=1)   # (B, S, 3)
    f_idx = rep_points_idx.reshape(B, S * m)                        # (B, S*m)

    all_to_rep = _square_distance(xyz_t, representative_xyz)        # (B, N, S)
    neg_dis, interp_idx = jax.lax.top_k(-all_to_rep, 3)             # (B, N, 3)
    dis = -neg_dis
    dis_inv = 1.0 / (dis + 1e-5)
    interp_w = dis_inv / jnp.sum(dis_inv, axis=-1, keepdims=True)   # (B, N, 3)

    # -------- scale features by attention score --------
    x = x * att_score[:, None, :]

    # -------- region_relation (hot path in Pallas) --------
    x_t = jnp.transpose(x, (0, 2, 1))                               # (B, N, C)
    gathered = jnp.take_along_axis(
        x_t, jnp.broadcast_to(f_idx[:, :, None], (B, S * m, C)), axis=1)
    cf_perm = gathered.reshape(B, S, m, C).transpose(0, 2, 1, 3)    # (B, m, S, C)

    enhanced_bsc = attn_fn(cf_perm, params["wk"], params["wq"],
                           params["wv"], params["wo"], params["bo"])  # (B, S, C)
    region_feature = jnp.transpose(enhanced_bsc, (0, 2, 1))           # (B, C, S)

    # -------- interpolation (3-NN weighted gather) --------
    gath = jnp.take_along_axis(
        region_feature,
        jnp.broadcast_to(interp_idx.reshape(B, 1, N * 3), (B, C, N * 3)),
        axis=2).reshape(B, C, N, 3)
    enhanced = jnp.sum(interp_w[:, None, :, :] * gath, axis=-1)      # (B, C, N)

    return x + enhanced


def init_params(key, C):
    k1, k2, k3, k4, k5 = jax.random.split(key, 5)
    s = 1.0 / math.sqrt(C)
    return {
        "wk": jax.random.normal(k1, (C, C), jnp.float32) * s,  # kconv weight
        "wq": jax.random.normal(k2, (C, C), jnp.float32) * s,  # qconv weight
        "wv": jax.random.normal(k3, (C, C), jnp.float32) * s,  # vconv weight
        "wo": jax.random.normal(k4, (C, C), jnp.float32) * s,  # outconv weight
        "bo": jax.random.normal(k5, (C,), jnp.float32) * s,    # outconv bias
    }


if __name__ == "__main__":
    key = jax.random.PRNGKey(0)
    B, C, N = 2, 32, 64
    sample_ratio, m = 4, 4

    kx, kxyz, kp = jax.random.split(key, 3)
    x = jax.random.normal(kx, (B, C, N), jnp.float32)
    xyz = jax.random.normal(kxyz, (B, 3, N), jnp.float32)
    lfe_idx = jnp.zeros((B, N, 20), jnp.int32)   # unused (DRP substitute)
    params = init_params(kp, C)

    fwd_pallas = jax.jit(functools.partial(
        irl_forward, sample_ratio=sample_ratio, m=m,
        attn_fn=region_attention_pallas))
    out = jax.block_until_ready(fwd_pallas(params, x, xyz, lfe_idx))

    ref = irl_forward(params, x, xyz, lfe_idx, sample_ratio, m,
                      attn_fn=region_attention_ref)
    ref = jax.block_until_ready(ref)

    # exact softmax divide in the kernel -> tight tolerance restored.
    np.testing.assert_allclose(np.asarray(out), np.asarray(ref),
                               rtol=1e-4, atol=1e-4)
    assert out.shape == (B, C, N)
    print("KERNEL_OK")
</pallas_src>

<mosaic_0001>
module attributes {stable_mosaic.version = 11 : i64} {
  func.func private @main(%arg0: i32) attributes {dimension_semantics = [#tpu.dimension_semantics<core_parallel>], iteration_bounds = array<i64: 2>, tpu.core_type = #tpu.core_type<sc_scalar_subcore>, window_params = []} {
    return
  }
}

module attributes {stable_mosaic.version = 11 : i64} {
  func.func private @main(%arg0: i32) attributes {dimension_semantics = [#tpu.dimension_semantics<core_parallel>], iteration_bounds = array<i64: 2>, tpu.core_type = #tpu.core_type<sc_scalar_subcore>, window_params = []} {
    return
  }
}

module attributes {stable_mosaic.version = 11 : i64} {
  func.func @kernel(%arg0: i32, %arg1: memref<2x2x16x32xf32, #tpu.memory_space<vmem>>, %arg2: memref<32x64xf32, #tpu.memory_space<vmem>>, %arg3: memref<32x32xf32, #tpu.memory_space<vmem>>, %arg4: memref<1x2x16x32xf32, #tpu.memory_space<vmem>>) attributes {dimension_semantics = [#tpu.dimension_semantics<parallel>], iteration_bounds = array<i64: 2>, scalar_prefetch = 0 : i64, scratch_operands = 0 : i64, tpu.core_type = #tpu.core_type<tc>, window_params = [{transform_indices = @transform_0, window_bounds = array<i64: 2, 2, 16, 32>}, {pipeline_mode = #tpu.pipeline_mode<synchronous>, transform_indices = @transform_1, window_bounds = array<i64: 32, 64>}, {pipeline_mode = #tpu.pipeline_mode<synchronous>, transform_indices = @transform_2, window_bounds = array<i64: 32, 32>}, {transform_indices = @transform_3, window_bounds = array<i64: 1, 2, 16, 32>}]} {
    %c0 = arith.constant 0 : index
    %c0_0 = arith.constant 0 : index
    %c0_1 = arith.constant 0 : index
    %c0_2 = arith.constant 0 : index
    %0 = vector.load %arg1[%c0, %c0_0, %c0_1, %c0_2] : memref<2x2x16x32xf32, #tpu.memory_space<vmem>>, vector<2x2x16x32xf32>
    %1 = vector.shape_cast %0 : vector<2x2x16x32xf32> to vector<4x16x32xf32>
    %2 = vector.shape_cast %0 : vector<2x2x16x32xf32> to vector<64x32xf32>
    %c0_3 = arith.constant 0 : index
    %c0_4 = arith.constant 0 : index
    %3 = vector.load %arg2[%c0_3, %c0_4] : memref<32x64xf32, #tpu.memory_space<vmem>>, vector<32x64xf32>
    %cst = arith.constant dense<0.000000e+00> : vector<64x64xf32>
    %4 = tpu.matmul %2, %3, %cst {dimension_numbers = #tpu.dot_dimension_numbers<[1], [0], [0], [1], [0, 0, 1, 1], [], []>} : vector<64x32xf32>, vector<32x64xf32>, vector<64x64xf32> -> vector<64x64xf32>
    %5 = vector.shape_cast %4 : vector<64x64xf32> to vector<4x16x64xf32>
    %6 = vector.extract_strided_slice %5 {offsets = [0, 0, 0], sizes = [4, 16, 32], strides = [1, 1, 1]} : vector<4x16x64xf32> to vector<4x16x32xf32>
    %7 = vector.extract_strided_slice %5 {offsets = [0, 0, 32], sizes = [4, 16, 32], strides = [1, 1, 1]} : vector<4x16x64xf32> to vector<4x16x32xf32>
    %cst_5 = arith.constant dense<0.000000e+00> : vector<4x16x16xf32>
    %8 = tpu.matmul %6, %1, %cst_5 {dimension_numbers = #tpu.dot_dimension_numbers<[2], [2], [1], [1], [0, 0, 0, 1, 1, 1], [0], [0]>} : vector<4x16x32xf32>, vector<4x16x32xf32>, vector<4x16x16xf32> -> vector<4x16x16xf32>
    %cst_6 = arith.constant 0.0441941731 : f32
    %9 = vector.broadcast %cst_6 : f32 to vector<4x16x16xf32>
    %10 = arith.mulf %8, %9 : vector<4x16x16xf32>
    %cst_7 = arith.constant dense<0xFF800000> : vector<4x16xf32>
    %11 = vector.multi_reduction <maximumf>, %10, %cst_7 [2] : vector<4x16x16xf32> to vector<4x16xf32>
    %12 = vector.shape_cast %11 : vector<4x16xf32> to vector<4x16x1xf32>
    %13 = vector.broadcast %12 : vector<4x16x1xf32> to vector<4x16x16xf32>
    %14 = arith.subf %10, %13 : vector<4x16x16xf32>
    %15 = math.exp %14 : vector<4x16x16xf32>
    %cst_8 = arith.constant dense<0.000000e+00> : vector<4x16xf32>
    %16 = vector.multi_reduction <add>, %15, %cst_8 [2] : vector<4x16x16xf32> to vector<4x16xf32>
    %17 = vector.shape_cast %16 : vector<4x16xf32> to vector<4x16x1xf32>
    %18 = vector.broadcast %17 : vector<4x16x1xf32> to vector<4x16x16xf32>
    %19 = arith.divf %15, %18 : vector<4x16x16xf32>
    %cst_9 = arith.constant dense<0.000000e+00> : vector<4x16x32xf32>
    %20 = tpu.matmul %19, %7, %cst_9 {dimension_numbers = #tpu.dot_dimension_numbers<[2], [1], [1], [2], [0, 0, 0, 1, 1, 2], [0], [0]>} : vector<4x16x16xf32>, vector<4x16x32xf32>, vector<4x16x32xf32> -> vector<4x16x32xf32>
    %21 = vector.shape_cast %20 : vector<4x16x32xf32> to vector<2x2x16x32xf32>
    %cst_10 = arith.constant dense<0.000000e+00> : vector<2x16x32xf32>
    %22 = vector.multi_reduction <add>, %21, %cst_10 [1] : vector<2x2x16x32xf32> to vector<2x16x32xf32>
    %cst_11 = arith.constant dense<0.000000e+00> : vector<2x16x32xf32>
    %23 = vector.multi_reduction <add>, %0, %cst_11 [1] : vector<2x2x16x32xf32> to vector<2x16x32xf32>
    %24 = vector.shape_cast %22 : vector<2x16x32xf32> to vector<32x32xf32>
    %c0_12 = arith.constant 0 : index
    %c0_13 = arith.constant 0 : index
    %25 = vector.load %arg3[%c0_12, %c0_13] : memref<32x32xf32, #tpu.memory_space<vmem>>, vector<32x32xf32>
    %cst_14 = arith.constant dense<0.000000e+00> : vector<32x32xf32>
    %26 = tpu.matmul %24, %25, %cst_14 {dimension_numbers = #tpu.dot_dimension_numbers<[1], [0], [0], [1], [0, 0, 1, 1], [], []>} : vector<32x32xf32>, vector<32x32xf32>, vector<32x32xf32> -> vector<32x32xf32>
    %27 = vector.shape_cast %26 : vector<32x32xf32> to vector<2x16x32xf32>
    %28 = arith.addf %27, %23 : vector<2x16x32xf32>
    %c0_15 = arith.constant 0 : index
    %c0_16 = arith.constant 0 : index
    %c0_17 = arith.constant 0 : index
    %c0_18 = arith.constant 0 : index
    %29 = vector.load %arg4[%c0_15, %c0_16, %c0_17, %c0_18] : memref<1x2x16x32xf32, #tpu.memory_space<vmem>>, vector<1x2x16x32xf32>
    %30 = vector.shape_cast %29 : vector<1x2x16x32xf32> to vector<2x16x32xf32>
    %31 = vector.shape_cast %28 : vector<2x16x32xf32> to vector<1x2x16x32xf32>
    tpu.vector_store %arg4[%c0_15, %c0_16, %c0_17, %c0_18], %31 {strides = array<i32>} : memref<1x2x16x32xf32, #tpu.memory_space<vmem>>, vector<1x2x16x32xf32>,
    return
  }
  func.func @transform_0(%arg0: i32) -> (i32, i32, i32, i32) {
    %c0_i32 = arith.constant 0 : i32
    %c0_i32_0 = arith.constant 0 : i32
    %c0_i32_1 = arith.constant 0 : i32
    %c0_i32_2 = arith.constant 0 : i32
    return %c0_i32, %arg0, %c0_i32_0, %c0_i32_1 : i32, i32, i32, i32
  }
  func.func @transform_1(%arg0: i32) -> (i32, i32) {
    %c0_i32 = arith.constant 0 : i32
    %c0_i32_0 = arith.constant 0 : i32
    %c0_i32_1 = arith.constant 0 : i32
    return %c0_i32, %c0_i32_0 : i32, i32
  }
  func.func @transform_2(%arg0: i32) -> (i32, i32) {
    %c0_i32 = arith.constant 0 : i32
    %c0_i32_0 = arith.constant 0 : i32
    %c0_i32_1 = arith.constant 0 : i32
    return %c0_i32, %c0_i32_0 : i32, i32
  }
  func.func @transform_3(%arg0: i32) -> (i32, i32, i32, i32) {
    %c0_i32 = arith.constant 0 : i32
    %c0_i32_0 = arith.constant 0 : i32
    %c0_i32_1 = arith.constant 0 : i32
    %c0_i32_2 = arith.constant 0 : i32
    return %arg0, %c0_i32, %c0_i32_0, %c0_i32_1 : i32, i32, i32, i32
  }
}

</mosaic_0001>

<llo_original>
// kernel: irl_forward.1
$region0: #{irl_forward.1}
  #allocation0 [shape = 'u32[]', space=smem, size = 0x4, offset = 0x4, fixed_abs, tag = 'smem constant byte address 0x4 - core index']
  #allocation1 [shape = 'u32[144,128]{1,0:T(1,128)}', space=vmem, size = 0x12000, scoped, tag = 'internal scratch']
  %s0 = inlined_call_operand.vmem [shape: f32[2,4,16,32], index: 0, kind: input, shape index: {}]
  %s1 = inlined_call_operand.vmem [shape: f32[32,64], index: 1, kind: input, shape index: {}]
  %s2 = inlined_call_operand.vmem [shape: f32[32,32], index: 2, kind: input, shape index: {}]
  %s3 = inlined_call_operand.vmem [shape: f32[2,2,16,32], index: 3, kind: output, shape index: {}]
  %s4 = sld [smem:[#allocation0]]
  $region83: #{irl_forward.1} parent=0
    _
  %s6 = ssub.s32 1, %s4
  %s7 = scalar_select 0, %s6, %s4
  $region1: #{irl_forward.1} parent=0
    #allocation2 [shape = 'u8[65536]{0}', space=vmem, size = 0x10000, scoped, tag = 'input window, operand 0']
    loop: start=0, step=1, limit=4
    $region2: #{irl_forward.1} parent=1 // loop_pre_header
      _
    $region3: #{irl_forward.1} parent=1 // loop_header
      %s9 = sphi 0, %s13
      %p10 = scmp.ge.s32.totalorder %s9, 4
      %s19 = sphi 0, %s21
      %s22 = sphi 0, %s19
      %s23 = sphi 0, %s22
      %s39 = sphi 0, %s23
      %s43 = sphi 0, %s43
      %s45 = sphi 0, %s43
      %s46 = sphi 0, %s45
      %s60 = sphi 0, %s46
      %s64 = sphi 0, %s64
      %s66 = sphi 0, %s64
      %s67 = sphi 0, %s66
      %s81 = sphi 0, %s67
      %s87 = sphi 0, %s89
      %s90 = sphi 0, %s87
      %s91 = sphi 0, %s90
      %s107 = sphi 0, %s91
    $region4: #{irl_forward.1} parent=1 // loop_header_branch
      %12 = sbr.rel (%p10) target = $region8
    $region5: #{irl_forward.1} parent=1 // loop_body
      %s14 = ssub.s32 %s9, 1
      %s15 = ssub.s32 %s9, 2
      %s16 = sadd.s32 %s9, 1
      %s17 = ssub.s32 %s9, %s16
      %p18 = scmp.eq.s32.totalorder %s17, 0
      %s20 = sadd.s32 %s19, 1
      %s21 = scalar_select %p18, %s19, %s20
      %p24 = pneg %p18
      %p25 = scmp.eq.s32.totalorder %s9, 1
      %p26 = por %p24, %p25
      %p27 = scmp.ne.s32.totalorder %s19, %s22
      %p28 = scmp.eq.s32.totalorder %s9, 0
      %p29 = por %p27, %p28
      %p30 = scmp.ne.s32.totalorder %s19, %s22
      %p31 = scmp.eq.s32.totalorder %s14, 1
      %p32 = por %p30, %p31
      %p33 = scmp.ne.s32.totalorder %s22, %s23
      %p34 = scmp.eq.s32.totalorder %s14, 0
      %p35 = por %p33, %p34
      %p36 = scmp.ne.s32.totalorder %s22, %s23
      %p37 = scmp.eq.s32.totalorder %s15, 1
      %p38 = por %p36, %p37
      %p40 = scmp.ne.s32.totalorder %s23, %s39
      %p41 = scmp.eq.s32.totalorder %s15, 0
      %p42 = por %p40, %p41
      %s44 = sadd.s32 %s43, 1
      %p47 = scmp.eq.s32.totalorder %s9, 1
      %p48 = scmp.ne.s32.totalorder %s43, %s45
      %p49 = scmp.eq.s32.totalorder %s9, 0
      %p50 = por %p48, %p49
      %p51 = scmp.ne.s32.totalorder %s43, %s45
      %p52 = scmp.eq.s32.totalorder %s14, 1
      %p53 = por %p51, %p52
      %p54 = scmp.ne.s32.totalorder %s45, %s46
      %p55 = scmp.eq.s32.totalorder %s14, 0
      %p56 = por %p54, %p55
      %p57 = scmp.ne.s32.totalorder %s45, %s46
      %p58 = scmp.eq.s32.totalorder %s15, 1
      %p59 = por %p57, %p58
      %p61 = scmp.ne.s32.totalorder %s46, %s60
      %p62 = scmp.eq.s32.totalorder %s15, 0
      %p63 = por %p61, %p62
      %s65 = sadd.s32 %s64, 1
      %p68 = scmp.eq.s32.totalorder %s9, 1
      %p69 = scmp.ne.s32.totalorder %s64, %s66
      %p70 = scmp.eq.s32.totalorder %s9, 0
      %p71 = por %p69, %p70
      %p72 = scmp.ne.s32.totalorder %s64, %s66
      %p73 = scmp.eq.s32.totalorder %s14, 1
      %p74 = por %p72, %p73
      %p75 = scmp.ne.s32.totalorder %s66, %s67
      %p76 = scmp.eq.s32.totalorder %s14, 0
      %p77 = por %p75, %p76
      %p78 = scmp.ne.s32.totalorder %s66, %s67
      %p79 = scmp.eq.s32.totalorder %s15, 1
      %p80 = por %p78, %p79
      %p82 = scmp.ne.s32.totalorder %s67, %s81
      %p83 = scmp.eq.s32.totalorder %s15, 0
      %p84 = por %p82, %p83
      %s85 = ssub.s32 %s9, %s16
      %p86 = scmp.eq.s32.totalorder %s85, 0
      %s88 = sadd.s32 %s87, 1
      %s89 = scalar_select %p86, %s87, %s88
      %p92 = pneg %p86
      %p93 = scmp.eq.s32.totalorder %s9, 1
      %p94 = por %p92, %p93
      %p95 = scmp.ne.s32.totalorder %s87, %s90
      %p96 = scmp.eq.s32.totalorder %s9, 0
      %p97 = por %p95, %p96
      %p98 = scmp.ne.s32.totalorder %s87, %s90
      %p99 = scmp.eq.s32.totalorder %s14, 1
      %p100 = por %p98, %p99
      %p101 = scmp.ne.s32.totalorder %s90, %s91
      %p102 = scmp.eq.s32.totalorder %s14, 0
      %p103 = por %p101, %p102
      %p104 = scmp.ne.s32.totalorder %s90, %s91
      %p105 = scmp.eq.s32.totalorder %s15, 1
      %p106 = por %p104, %p105
      %p108 = scmp.ne.s32.totalorder %s91, %s107
      %p109 = scmp.eq.s32.totalorder %s15, 0
      %p110 = por %p108, %p109
      %p111 = scmp.le.s32.totalorder 1, %s9
      %p112 = scmp.lt.s32.totalorder %s9, 3
      %p113 = pnand %p111, %p112
      %p114 = pneg %p113
      // Predicated region
      $region9: #{irl_forward.1} parent=5 // pred_check
        _
      $region10: #{irl_forward.1} parent=5 // pred_check_branch
        %116 = sbr.rel (%p113) target = $region12
      $region11: #{irl_forward.1} parent=5 // pred_region
        %s117 = ssub.s32 %s9, 1
        // Predicated region
        $region13: #{irl_forward.1} parent=11 // pred_check
          %p118 = pneg %p56
        $region14: #{irl_forward.1} parent=11 // pred_check_branch
          %120 = sbr.rel (%p118) target = $region16
        $region15: #{irl_forward.1} parent=11 // pred_region
          _
        $region16: #{irl_forward.1} parent=11 // pred_fallthru
          _
        // Predicated region
        $region17: #{irl_forward.1} parent=11 // pred_check
          %p121 = pneg %p77
        $region18: #{irl_forward.1} parent=11 // pred_check_branch
          %123 = sbr.rel (%p121) target = $region20
        $region19: #{irl_forward.1} parent=11 // pred_region
          _
        $region20: #{irl_forward.1} parent=11 // pred_fallthru
          _
      $region12: #{irl_forward.1} parent=5 // pred_fallthru
        _
      %p124 = scmp.lt.s32.totalorder %s9, 2
      // Predicated region
      $region21: #{irl_forward.1} parent=5 // pred_check
        %p125 = pneg %p124
      $region22: #{irl_forward.1} parent=5 // pred_check_branch
        %127 = sbr.rel (%p125) target = $region24
      $region23: #{irl_forward.1} parent=5 // pred_region
        // Predicated region
        $region25: #{irl_forward.1} parent=23 // pred_check
          %p128 = pneg %p29
        $region26: #{irl_forward.1} parent=23 // pred_check_branch
          %130 = sbr.rel (%p128) target = $region28
        $region27: #{irl_forward.1} parent=23 // pred_region
          %s131 = sand.u32 %s19, 1
          %s132 = sand.u32 %s19, 1
          %s133 = smul.addr %s132, 64
          %s134 = scalar_lea.vmem [#allocation2], %s133
          %s135 = smul.u32 2, %s9
          %s136 = smul.addr %s135, 2
          %s137 = smul.addr %s136, 8
          %s138 = scalar_lea.vmem %s0, %s137
          // Predicated region
          $region29: #{irl_forward.1} parent=27 // pred_check
            _
          $region30: #{irl_forward.1} parent=27 // pred_check_branch
            %140 = sbr.rel (0) target = $region32
          $region31: #{irl_forward.1} parent=27 // pred_region
            // Predicated region
            $region33: #{irl_forward.1} parent=31 // pred_check
              _
            $region34: #{irl_forward.1} parent=31 // pred_check_branch
              %142 = sbr.rel (0) target = $region36
            $region35: #{irl_forward.1} parent=31 // pred_region
              // Predicated region
              $region48: #{irl_forward.1} parent=35 // pred_check
                _
              $region49: #{irl_forward.1} parent=35 // pred_check_branch
                %171 = sbr.rel (0) target = $region51
              $region50: #{irl_forward.1} parent=35 // pred_region
                loop: start=0, step=1, limit=1
                $region52: #{irl_forward.1} parent=50 // loop_pre_header
                  _
                $region53: #{irl_forward.1} parent=50 // loop_header
                  %s173 = sphi 0, %s177
                  %p174 = scmp.ge.s32.totalorder %s173, 1
                  %s178 = sphi %s138, %s138
                  %s179 = sphi %s134, %s134
                $region54: #{irl_forward.1} parent=50 // loop_header_branch
                  %176 = sbr.rel (%p174) target = $region58
                $region55: #{irl_forward.1} parent=50 // loop_body
                  %v180 = vld [vmem:[%s178] sm:$0xff]
                  %181 = vst [vmem:[%s179] sm:$0xff] %v180
                  %v182 = vld [vmem:[%s178 + $0x8] sm:$0xff]
                  %183 = vst [vmem:[%s179 + $0x8] sm:$0xff] %v182
                  %v184 = vld [vmem:[%s178 + $0x10] sm:$0xff]
                  %185 = vst [vmem:[%s179 + $0x10] sm:$0xff] %v184
                  %v186 = vld [vmem:[%s178 + $0x18] sm:$0xff]
                  %187 = vst [vmem:[%s179 + $0x18] sm:$0xff] %v186
                  %v188 = vld [vmem:[%s178 + $0x40] sm:$0xff]
                  %189 = vst [vmem:[%s179 + $0x20] sm:$0xff] %v188
                  %v190 = vld [vmem:[%s178 + $0x48] sm:$0xff]
                  %191 = vst [vmem:[%s179 + $0x28] sm:$0xff] %v190
                  %v192 = vld [vmem:[%s178 + $0x50] sm:$0xff]
                  %193 = vst [vmem:[%s179 + $0x30] sm:$0xff] %v192
                  %v194 = vld [vmem:[%s178 + $0x58] sm:$0xff]
                  %195 = vst [vmem:[%s179 + $0x38] sm:$0xff] %v194
                $region56: #{irl_forward.1} parent=50 // loop_footer
                  %s177 = sadd.s32 1, %s173
                $region57: #{irl_forward.1} parent=50 // loop_footer_branch
                  %172 = sbr.rel target = $region53
                $region58: #{irl_forward.1} parent=50 // loop_exit
                  _
              $region51: #{irl_forward.1} parent=35 // pred_fallthru
                _
              // Predicated region
              $region59: #{irl_forward.1} parent=35 // pred_check
                _
              $region60: #{irl_forward.1} parent=35 // pred_check_branch
                %197 = sbr.rel target = $region62
              $region61: #{irl_forward.1} parent=35 // pred_region
                _
              $region62: #{irl_forward.1} parent=35 // pred_fallthru
                _
            $region36: #{irl_forward.1} parent=31 // pred_fallthru
              _
            // Predicated region
            $region37: #{irl_forward.1} parent=31 // pred_check
              _
            $region38: #{irl_forward.1} parent=31 // pred_check_branch
              %144 = sbr.rel target = $region40
            $region39: #{irl_forward.1} parent=31 // pred_region
              loop: start=0, step=1, limit=1
              $region41: #{irl_forward.1} parent=39 // loop_pre_header
                _
              $region42: #{irl_forward.1} parent=39 // loop_header
                %s147 = sphi 0, %s151
                %p148 = scmp.ge.s32.totalorder %s147, 1
                %s152 = sphi %s138, %s138
                %s153 = sphi %s134, %s134
              $region43: #{irl_forward.1} parent=39 // loop_header_branch
                %150 = sbr.rel (%p148) target = $region47
              $region44: #{irl_forward.1} parent=39 // loop_body
                %v154 = vld [vmem:[%s152] sm:$0xff]
                %155 = vst [vmem:[%s153] sm:$0xff] %v154
                %v156 = vld [vmem:[%s152 + $0x8] sm:$0xff]
                %157 = vst [vmem:[%s153 + $0x8] sm:$0xff] %v156
                %v158 = vld [vmem:[%s152 + $0x10] sm:$0xff]
                %159 = vst [vmem:[%s153 + $0x10] sm:$0xff] %v158
                %v160 = vld [vmem:[%s152 + $0x18] sm:$0xff]
                %161 = vst [vmem:[%s153 + $0x18] sm:$0xff] %v160
                %v162 = vld [vmem:[%s152 + $0x40] sm:$0xff]
                %163 = vst [vmem:[%s153 + $0x20] sm:$0xff] %v162
                %v164 = vld [vmem:[%s152 + $0x48] sm:$0xff]
                %165 = vst [vmem:[%s153 + $0x28] sm:$0xff] %v164
                %v166 = vld [vmem:[%s152 + $0x50] sm:$0xff]
                %167 = vst [vmem:[%s153 + $0x30] sm:$0xff] %v166
                %v168 = vld [vmem:[%s152 + $0x58] sm:$0xff]
                %169 = vst [vmem:[%s153 + $0x38] sm:$0xff] %v168
              $region45: #{irl_forward.1} parent=39 // loop_footer
                %s151 = sadd.s32 1, %s147
              $region46: #{irl_forward.1} parent=39 // loop_footer_branch
                %146 = sbr.rel target = $region42
              $region47: #{irl_forward.1} parent=39 // loop_exit
                _
            $region40: #{irl_forward.1} parent=31 // pred_fallthru
              _
          $region32: #{irl_forward.1} parent=27 // pred_fallthru
            _
          %198 = vnop
        $region28: #{irl_forward.1} parent=23 // pred_fallthru
          _
      $region24: #{irl_forward.1} parent=5 // pred_fallthru
        _
      %p199 = scmp.le.s32.totalorder 1, %s9
      %p200 = scmp.lt.s32.totalorder %s9, 3
      %p201 = pnand %p199, %p200
      %p202 = pneg %p201
      // Predicated region
      $region63: #{irl_forward.1} parent=5 // pred_check
        _
      $region64: #{irl_forward.1} parent=5 // pred_check_branch
        %204 = sbr.rel (%p201) target = $region66
      $region65: #{irl_forward.1} parent=5 // pred_region
        %s205 = ssub.s32 %s9, 1
        %s206 = sand.u32 %s22, 1
        %s207 = sand.u32 %s22, 1
        %s208 = smul.addr %s207, 64
        %s209 = scalar_lea.vmem [#allocation2], %s208
        // Predicated region
        $region67: #{irl_forward.1} parent=65 // pred_check
          %p210 = pneg %p35
        $region68: #{irl_forward.1} parent=65 // pred_check_branch
          %212 = sbr.rel (%p210) target = $region70
        $region69: #{irl_forward.1} parent=65 // pred_region
          _
        $region70: #{irl_forward.1} parent=65 // pred_fallthru
          _
        %s213 = sand.u32 %s22, 1
        %s214 = sand.u32 %s22, 1
        %s215 = smul.addr %s214, 64
        %s216 = scalar_lea.vmem [#allocation2], %s215
        %p217 = pneg %p35
        %p218 = pneg %p32
        %p219 = pneg %p56
        %p220 = pneg %p53
        %p221 = pneg %p77
        %p222 = pneg %p74
        %p223 = pneg %p103
        %p224 = pneg %p100
        %p225 = scmp.lt.s32.totalorder %s14, 1
        %s226 = scalar_select %p225, %s14, 1
        %s227 = smul.addr %s226, 4
        %s228 = smul.addr %s227, 8
        %s229 = scalar_lea.vmem %s3, %s228
        %s230 = smul.u32 2, %s14
        %p231 = scmp.lt.s32.totalorder %s14, 1
        %s232 = scalar_select %p231, %s14, 1
        %s233 = smul.addr %s232, 4
        %s234 = smul.addr %s233, 8
        %s235 = scalar_lea.vmem %s3, %s234
        %v236 = vld [vmem:[%s209] sm:$0xff]
        %v237 = vld [vmem:[%s209 + $0x8] sm:$0xff]
        %v238 = vld [vmem:[%s209 + $0x10] sm:$0xff]
        %v239 = vld [vmem:[%s209 + $0x18] sm:$0xff]
        %v240 = vld [vmem:[%s209 + $0x20] sm:$0xff]
        %v241 = vld [vmem:[%s209 + $0x28] sm:$0xff]
        %v242 = vld [vmem:[%s209 + $0x30] sm:$0xff]
        %v243 = vld [vmem:[%s209 + $0x38] sm:$0xff]
        %v244 = vld [vmem:[%s1] sm:$0xff]
        %v245 = vld [vmem:[%s1 + $0x8] sm:$0xff]
        %v246 = vld [vmem:[%s1 + $0x10] sm:$0xff]
        %v247 = vld [vmem:[%s1 + $0x18] sm:$0xff]
        %vm248 = vcmask 261120
        %v250 = vsel %vm248, %v236, 0
        %v253 = vsel %vm248, %v237, 0
        %v256 = vsel %vm248, %v238, 0
        %v259 = vsel %vm248, %v239, 0
        %v262 = vsel %vm248, %v240, 0
        %v265 = vsel %vm248, %v241, 0
        %v268 = vsel %vm248, %v242, 0
        %v271 = vsel %vm248, %v243, 0
        %273 = vmatprep.subr.mxu0 0.0
        %274 = vmatpush1.msra.mxu0 %v244
        %275 = vmatprep.subr.mxu0 0.0
        %276 = vmatpush1.msra.mxu0 %v245
        %277 = vmatprep.subr.mxu0 0.0
        %278 = vmatpush1.msra.mxu0 %v246
        %279 = vmatprep.subr.mxu0 0.0
        %280 = vmatpush1.msra.mxu0 %v247
        %281 = vmatprep.subr.mxu0 0.0
        %282 = vmatpush1.msra.mxu0 0.0
        %283 = vmatprep.subr.mxu0 0.0
        %284 = vmatpush1.msra.mxu0 0.0
        %285 = vmatprep.subr.mxu0 0.0
        %286 = vmatpush1.msra.mxu0 0.0
        %287 = vmatprep.subr.mxu0 0.0
        %288 = vmatpush1.msra.mxu0 0.0
        %289 = vmatprep.subr.mxu0 0.0
        %290 = vmatpush1.msra.mxu0 0.0
        %291 = vmatprep.subr.mxu0 0.0
        %292 = vmatpush1.msra.mxu0 0.0
        %293 = vmatprep.subr.mxu0 0.0
        %294 = vmatpush1.msra.mxu0 0.0
        %295 = vmatprep.subr.mxu0 0.0
        %296 = vmatpush1.msra.mxu0 0.0
        %297 = vmatprep.subr.mxu0 0.0
        %298 = vmatpush1.msra.mxu0 0.0
        %299 = vmatprep.subr.mxu0 0.0
        %300 = vmatpush1.msra.mxu0 0.0
        %301 = vmatprep.subr.mxu0 0.0
        %302 = vmatpush1.msra.mxu0 0.0
        %303 = vmatprep.subr.mxu0 0.0
        %304 = vmatpush1.msra.mxu0 0.0
        %305 = vmatprep.subr.mxu0 0.0
        %306 = vmatpush1.msra.mxu0 0.0
        %307 = vmatprep.subr.mxu0 0.0
        %308 = vmatpush1.msra.mxu0 0.0
        %309 = vmatprep.subr.mxu0 0.0
        %310 = vmatpush1.msra.mxu0 0.0
        %311 = vmatprep.subr.mxu0 0.0
        %312 = vmatpush1.msra.mxu0 0.0
        %313 = vmatprep.subr.mxu0 0.0
        %314 = vmatpush1.msra.mxu0 0.0
        %315 = vmatprep.subr.mxu0 0.0
        %316 = vmatpush1.msra.mxu0 0.0
        %317 = vmatprep.subr.mxu0 0.0
        %318 = vmatpush1.msra.mxu0 0.0
        %319 = vmatprep.subr.mxu0 0.0
        %320 = vmatpush1.msra.mxu0 0.0
        %321 = vmatprep.subr.mxu0 0.0
        %322 = vmatpush1.msra.mxu0 0.0
        %323 = vmatprep.subr.mxu0 0.0
        %324 = vmatpush1.msra.mxu0 0.0
        %325 = vmatprep.subr.mxu0 0.0
        %326 = vmatpush1.msra.mxu0 0.0
        %327 = vmatprep.subr.mxu0 0.0
        %328 = vmatpush1.msra.mxu0 0.0
        %329 = vmatprep.subr.mxu0 0.0
        %330 = vmatpush1.msra.mxu0 0.0
        %331 = vmatprep.subr.mxu0 0.0
        %332 = vmatpush1.msra.mxu0 0.0
        %333 = vmatprep.subr.mxu0 0.0
        %334 = vmatpush1.msra.mxu0 0.0
        %335 = vmatprep.subr.mxu0 0.0
        %336 = vmatpush1.msra.mxu0 0.0
        %337 = vmatprep.mubr.f32.mxu0 0.0
        %338 = vmatmul.mubr.f32.gmra.mrb[0].mxu0 %v250
        %v339 = vpop.f32.mrb[0].mxu0
        %v340 = vadd.f32 0.0, %v339
        %v341 = vpop.f32.mrb[0].mxu0
        %342 = vmatprep.mubr.f32.mxu0 0.0
        %343 = vmatmul.mubr.f32.gmra.mrb[0].mxu0 %v253
        %v344 = vpop.f32.mrb[0].mxu0
        %v345 = vadd.f32 0.0, %v344
        %v346 = vpop.f32.mrb[0].mxu0
        %347 = vmatprep.mubr.f32.mxu0 0.0
        %348 = vmatmul.mubr.f32.gmra.mrb[0].mxu0 %v256
        %v349 = vpop.f32.mrb[0].mxu0
        %v350 = vadd.f32 0.0, %v349
        %v351 = vpop.f32.mrb[0].mxu0
        %352 = vmatprep.mubr.f32.mxu0 0.0
        %353 = vmatmul.mubr.f32.gmra.mrb[0].mxu0 %v259
        %v354 = vpop.f32.mrb[0].mxu0
        %v355 = vadd.f32 0.0, %v354
        %v356 = vpop.f32.mrb[0].mxu0
        %357 = vmatprep.mubr.f32.mxu0 0.0
        %358 = vmatmul.mubr.f32.gmra.mrb[0].mxu0 %v262
        %v359 = vpop.f32.mrb[0].mxu0
        %v360 = vadd.f32 0.0, %v359
        %v361 = vpop.f32.mrb[0].mxu0
        %362 = vmatprep.mubr.f32.mxu0 0.0
        %363 = vmatmul.mubr.f32.gmra.mrb[0].mxu0 %v265
        %v364 = vpop.f32.mrb[0].mxu0
        %v365 = vadd.f32 0.0, %v364
        %v366 = vpop.f32.mrb[0].mxu0
        %367 = vmatprep.mubr.f32.mxu0 0.0
        %368 = vmatmul.mubr.f32.gmra.mrb[0].mxu0 %v268
        %v369 = vpop.f32.mrb[0].mxu0
        %v370 = vadd.f32 0.0, %v369
        %v371 = vpop.f32.mrb[0].mxu0
        %372 = vmatprep.mubr.f32.mxu0 0.0
        %373 = vmatmul.mubr.f32.gmra.mrb[0].mxu0 %v271
        %v374 = vpop.f32.mrb[0].mxu0
        %v375 = vadd.f32 0.0, %v374
        %v376 = vpop.f32.mrb[0].mxu0
        %377 = vdwg.mxu0
        %v379 = vsel %vm248, %v340, 0
        %v382 = vsel %vm248, %v345, 0
        %384 = vmatprep.subr.mxu0 0.0
        %385 = vmatpush1.xpose.msra.mxu0 %v250
        %386 = vmatprep.subr.mxu0 0.0
        %387 = vmatpush1.xpose.msra.mxu0 %v253
        %388 = vmatprep.subr.mxu0 0.0
        %389 = vmatpush1.xpose.msra.mxu0 0.0
        %390 = vmatprep.subr.mxu0 0.0
        %391 = vmatpush1.xpose.msra.mxu0 0.0
        %392 = vmatprep.subr.mxu0 0.0
        %393 = vmatpush1.xpose.msra.mxu0 0.0
        %394 = vmatprep.subr.mxu0 0.0
        %395 = vmatpush1.xpose.msra.mxu0 0.0
        %396 = vmatprep.subr.mxu0 0.0
        %397 = vmatpush1.xpose.msra.mxu0 0.0
        %398 = vmatprep.subr.mxu0 0.0
        %399 = vmatpush1.xpose.msra.mxu0 0.0
        %400 = vmatprep.subr.mxu0 0.0
        %401 = vmatpush1.xpose.msra.mxu0 0.0
        %402 = vmatprep.subr.mxu0 0.0
        %403 = vmatpush1.xpose.msra.mxu0 0.0
        %404 = vmatprep.subr.mxu0 0.0
        %405 = vmatpush1.xpose.msra.mxu0 0.0
        %406 = vmatprep.subr.mxu0 0.0
        %407 = vmatpush1.xpose.msra.mxu0 0.0
        %408 = vmatprep.subr.mxu0 0.0
        %409 = vmatpush1.xpose.msra.mxu0 0.0
        %410 = vmatprep.subr.mxu0 0.0
        %411 = vmatpush1.xpose.msra.mxu0 0.0
        %412 = vmatprep.subr.mxu0 0.0
        %413 = vmatpush1.xpose.msra.mxu0 0.0
        %414 = vmatprep.subr.mxu0 0.0
        %415 = vmatpush1.xpose.msra.mxu0 0.0
        %416 = vmatprep.subr.mxu0 0.0
        %417 = vmatpush1.xpose.msra.mxu0 0.0
        %418 = vmatprep.subr.mxu0 0.0
        %419 = vmatpush1.xpose.msra.mxu0 0.0
        %420 = vmatprep.subr.mxu0 0.0
        %421 = vmatpush1.xpose.msra.mxu0 0.0
        %422 = vmatprep.subr.mxu0 0.0
        %423 = vmatpush1.xpose.msra.mxu0 0.0
        %424 = vmatprep.subr.mxu0 0.0
        %425 = vmatpush1.xpose.msra.mxu0 0.0
        %426 = vmatprep.subr.mxu0 0.0
        %427 = vmatpush1.xpose.msra.mxu0 0.0
        %428 = vmatprep.subr.mxu0 0.0
        %429 = vmatpush1.xpose.msra.mxu0 0.0
        %430 = vmatprep.subr.mxu0 0.0
        %431 = vmatpush1.xpose.msra.mxu0 0.0
        %432 = vmatprep.subr.mxu0 0.0
        %433 = vmatpush1.xpose.msra.mxu0 0.0
        %434 = vmatprep.subr.mxu0 0.0
        %435 = vmatpush1.xpose.msra.mxu0 0.0
        %436 = vmatprep.subr.mxu0 0.0
        %437 = vmatpush1.xpose.msra.mxu0 0.0
        %438 = vmatprep.subr.mxu0 0.0
        %439 = vmatpush1.xpose.msra.mxu0 0.0
        %440 = vmatprep.subr.mxu0 0.0
        %441 = vmatpush1.xpose.msra.mxu0 0.0
        %442 = vmatprep.subr.mxu0 0.0
        %443 = vmatpush1.xpose.msra.mxu0 0.0
        %444 = vmatprep.subr.mxu0 0.0
        %445 = vmatpush1.xpose.msra.mxu0 0.0
        %446 = vmatprep.subr.mxu0 0.0
        %447 = vmatpush1.xpose.msra.mxu0 0.0
        %448 = vmatprep.mubr.f32.mxu0 0.0
        %449 = vmatmul.mubr.f32.gmra.mrb[0].mxu0 %v379
        %v450 = vpop.f32.mrb[0].mxu0
        %v451 = vadd.f32 0.0, %v450
        %v452 = vpop.f32.mrb[0].mxu0
        %453 = vmatprep.mubr.f32.mxu0 0.0
        %454 = vmatmul.mubr.f32.gmra.mrb[0].mxu0 %v382
        %v455 = vpop.f32.mrb[0].mxu0
        %v456 = vadd.f32 0.0, %v455
        %v457 = vpop.f32.mrb[0].mxu0
        %458 = vdwg.mxu0
        %v460 = vsel %vm248, %v350, 0
        %v463 = vsel %vm248, %v355, 0
        %465 = vmatprep.subr.mxu0 0.0
        %466 = vmatpush1.xpose.msra.mxu0 %v256
        %467 = vmatprep.subr.mxu0 0.0
        %468 = vmatpush1.xpose.msra.mxu0 %v259
        %469 = vmatprep.subr.mxu0 0.0
        %470 = vmatpush1.xpose.msra.mxu0 0.0
        %471 = vmatprep.subr.mxu0 0.0
        %472 = vmatpush1.xpose.msra.mxu0 0.0
        %473 = vmatprep.subr.mxu0 0.0
        %474 = vmatpush1.xpose.msra.mxu0 0.0
        %475 = vmatprep.subr.mxu0 0.0
        %476 = vmatpush1.xpose.msra.mxu0 0.0
        %477 = vmatprep.subr.mxu0 0.0
        %478 = vmatpush1.xpose.msra.mxu0 0.0
        %479 = vmatprep.subr.mxu0 0.0
        %480 = vmatpush1.xpose.msra.mxu0 0.0
        %481 = vmatprep.subr.mxu0 0.0
        %482 = vmatpush1.xpose.msra.mxu0 0.0
        %483 = vmatprep.subr.mxu0 0.0
        %484 = vmatpush1.xpose.msra.mxu0 0.0
        %485 = vmatprep.subr.mxu0 0.0
        %486 = vmatpush1.xpose.msra.mxu0 0.0
        %487 = vmatprep.subr.mxu0 0.0
        %488 = vmatpush1.xpose.msra.mxu0 0.0
        %489 = vmatprep.subr.mxu0 0.0
        %490 = vmatpush1.xpose.msra.mxu0 0.0
        %491 = vmatprep.subr.mxu0 0.0
        %492 = vmatpush1.xpose.msra.mxu0 0.0
        %493 = vmatprep.subr.mxu0 0.0
        %494 = vmatpush1.xpose.msra.mxu0 0.0
        %495 = vmatprep.subr.mxu0 0.0
        %496 = vmatpush1.xpose.msra.mxu0 0.0
        %497 = vmatprep.subr.mxu0 0.0
        %498 = vmatpush1.xpose.msra.mxu0 0.0
        %499 = vmatprep.subr.mxu0 0.0
        %500 = vmatpush1.xpose.msra.mxu0 0.0
        %501 = vmatprep.subr.mxu0 0.0
        %502 = vmatpush1.xpose.msra.mxu0 0.0
        %503 = vmatprep.subr.mxu0 0.0
        %504 = vmatpush1.xpose.msra.mxu0 0.0
        %505 = vmatprep.subr.mxu0 0.0
        %506 = vmatpush1.xpose.msra.mxu0 0.0
        %507 = vmatprep.subr.mxu0 0.0
        %508 = vmatpush1.xpose.msra.mxu0 0.0
        %509 = vmatprep.subr.mxu0 0.0
        %510 = vmatpush1.xpose.msra.mxu0 0.0
        %511 = vmatprep.subr.mxu0 0.0
        %512 = vmatpush1.xpose.msra.mxu0 0.0
        %513 = vmatprep.subr.mxu0 0.0
        %514 = vmatpush1.xpose.msra.mxu0 0.0
        %515 = vmatprep.subr.mxu0 0.0
        %516 = vmatpush1.xpose.msra.mxu0 0.0
        %517 = vmatprep.subr.mxu0 0.0
        %518 = vmatpush1.xpose.msra.mxu0 0.0
        %519 = vmatprep.subr.mxu0 0.0
        %520 = vmatpush1.xpose.msra.mxu0 0.0
        %521 = vmatprep.subr.mxu0 0.0
        %522 = vmatpush1.xpose.msra.mxu0 0.0
        %523 = vmatprep.subr.mxu0 0.0
        %524 = vmatpush1.xpose.msra.mxu0 0.0
        %525 = vmatprep.subr.mxu0 0.0
        %526 = vmatpush1.xpose.msra.mxu0 0.0
        %527 = vmatprep.subr.mxu0 0.0
        %528 = vmatpush1.xpose.msra.mxu0 0.0
        %529 = vmatprep.mubr.f32.mxu0 0.0
        %530 = vmatmul.mubr.f32.gmra.mrb[0].mxu0 %v460
        %v531 = vpop.f32.mrb[0].mxu0
        %v532 = vadd.f32 0.0, %v531
        %v533 = vpop.f32.mrb[0].mxu0
        %534 = vmatprep.mubr.f32.mxu0 0.0
        %535 = vmatmul.mubr.f32.gmra.mrb[0].mxu0 %v463
        %v536 = vpop.f32.mrb[0].mxu0
        %v537 = vadd.f32 0.0, %v536
        %v538 = vpop.f32.mrb[0].mxu0
        %539 = vdwg.mxu0
        %v541 = vsel %vm248, %v360, 0
        %v544 = vsel %vm248, %v365, 0
        %546 = vmatprep.subr.mxu0 0.0
        %547 = vmatpush1.xpose.msra.mxu0 %v262
        %548 = vmatprep.subr.mxu0 0.0
        %549 = vmatpush1.xpose.msra.mxu0 %v265
        %550 = vmatprep.subr.mxu0 0.0
        %551 = vmatpush1.xpose.msra.mxu0 0.0
        %552 = vmatprep.subr.mxu0 0.0
        %553 = vmatpush1.xpose.msra.mxu0 0.0
        %554 = vmatprep.subr.mxu0 0.0
        %555 = vmatpush1.xpose.msra.mxu0 0.0
        %556 = vmatprep.subr.mxu0 0.0
        %557 = vmatpush1.xpose.msra.mxu0 0.0
        %558 = vmatprep.subr.mxu0 0.0
        %559 = vmatpush1.xpose.msra.mxu0 0.0
        %560 = vmatprep.subr.mxu0 0.0
        %561 = vmatpush1.xpose.msra.mxu0 0.0
        %562 = vmatprep.subr.mxu0 0.0
        %563 = vmatpush1.xpose.msra.mxu0 0.0
        %564 = vmatprep.subr.mxu0 0.0
        %565 = vmatpush1.xpose.msra.mxu0 0.0
        %566 = vmatprep.subr.mxu0 0.0
        %567 = vmatpush1.xpose.msra.mxu0 0.0
        %568 = vmatprep.subr.mxu0 0.0
        %569 = vmatpush1.xpose.msra.mxu0 0.0
        %570 = vmatprep.subr.mxu0 0.0
        %571 = vmatpush1.xpose.msra.mxu0 0.0
        %572 = vmatprep.subr.mxu0 0.0
        %573 = vmatpush1.xpose.msra.mxu0 0.0
        %574 = vmatprep.subr.mxu0 0.0
        %575 = vmatpush1.xpose.msra.mxu0 0.0
        %576 = vmatprep.subr.mxu0 0.0
        %577 = vmatpush1.xpose.msra.mxu0 0.0
        %578 = vmatprep.subr.mxu0 0.0
        %579 = vmatpush1.xpose.msra.mxu0 0.0
        %580 = vmatprep.subr.mxu0 0.0
        %581 = vmatpush1.xpose.msra.mxu0 0.0
        %582 = vmatprep.subr.mxu0 0.0
        %583 = vmatpush1.xpose.msra.mxu0 0.0
        %584 = vmatprep.subr.mxu0 0.0
        %585 = vmatpush1.xpose.msra.mxu0 0.0
        %586 = vmatprep.subr.mxu0 0.0
        %587 = vmatpush1.xpose.msra.mxu0 0.0
        %588 = vmatprep.subr.mxu0 0.0
        %589 = vmatpush1.xpose.msra.mxu0 0.0
        %590 = vmatprep.subr.mxu0 0.0
        %591 = vmatpush1.xpose.msra.mxu0 0.0
        %592 = vmatprep.subr.mxu0 0.0
        %593 = vmatpush1.xpose.msra.mxu0 0.0
        %594 = vmatprep.subr.mxu0 0.0
        %595 = vmatpush1.xpose.msra.mxu0 0.0
        %596 = vmatprep.subr.mxu0 0.0
        %597 = vmatpush1.xpose.msra.mxu0 0.0
        %598 = vmatprep.subr.mxu0 0.0
        %599 = vmatpush1.xpose.msra.mxu0 0.0
        %600 = vmatprep.subr.mxu0 0.0
        %601 = vmatpush1.xpose.msra.mxu0 0.0
        %602 = vmatprep.subr.mxu0 0.0
        %603 = vmatpush1.xpose.msra.mxu0 0.0
        %604 = vmatprep.subr.mxu0 0.0
        %605 = vmatpush1.xpose.msra.mxu0 0.0
        %606 = vmatprep.subr.mxu0 0.0
        %607 = vmatpush1.xpose.msra.mxu0 0.0
        %608 = vmatprep.subr.mxu0 0.0
        %609 = vmatpush1.xpose.msra.mxu0 0.0
        %610 = vmatprep.mubr.f32.mxu0 0.0
        %611 = vmatmul.mubr.f32.gmra.mrb[0].mxu0 %v541
        %v612 = vpop.f32.mrb[0].mxu0
        %v613 = vadd.f32 0.0, %v612
        %v614 = vpop.f32.mrb[0].mxu0
        %615 = vmatprep.mubr.f32.mxu0 0.0
        %616 = vmatmul.mubr.f32.gmra.mrb[0].mxu0 %v544
        %v617 = vpop.f32.mrb[0].mxu0
        %v618 = vadd.f32 0.0, %v617
        %v619 = vpop.f32.mrb[0].mxu0
        %620 = vdwg.mxu0
        %v622 = vsel %vm248, %v370, 0
        %v625 = vsel %vm248, %v375, 0
        %627 = vmatprep.subr.mxu0 0.0
        %628 = vmatpush1.xpose.msra.mxu0 %v268
        %629 = vmatprep.subr.mxu0 0.0
        %630 = vmatpush1.xpose.msra.mxu0 %v271
        %631 = vmatprep.subr.mxu0 0.0
        %632 = vmatpush1.xpose.msra.mxu0 0.0
        %633 = vmatprep.subr.mxu0 0.0
        %634 = vmatpush1.xpose.msra.mxu0 0.0
        %635 = vmatprep.subr.mxu0 0.0
        %636 = vmatpush1.xpose.msra.mxu0 0.0
        %637 = vmatprep.subr.mxu0 0.0
        %638 = vmatpush1.xpose.msra.mxu0 0.0
        %639 = vmatprep.subr.mxu0 0.0
        %640 = vmatpush1.xpose.msra.mxu0 0.0
        %641 = vmatprep.subr.mxu0 0.0
        %642 = vmatpush1.xpose.msra.mxu0 0.0
        %643 = vmatprep.subr.mxu0 0.0
        %644 = vmatpush1.xpose.msra.mxu0 0.0
        %645 = vmatprep.subr.mxu0 0.0
        %646 = vmatpush1.xpose.msra.mxu0 0.0
        %647 = vmatprep.subr.mxu0 0.0
        %648 = vmatpush1.xpose.msra.mxu0 0.0
        %649 = vmatprep.subr.mxu0 0.0
        %650 = vmatpush1.xpose.msra.mxu0 0.0
        %651 = vmatprep.subr.mxu0 0.0
        %652 = vmatpush1.xpose.msra.mxu0 0.0
        %653 = vmatprep.subr.mxu0 0.0
        %654 = vmatpush1.xpose.msra.mxu0 0.0
        %655 = vmatprep.subr.mxu0 0.0
        %656 = vmatpush1.xpose.msra.mxu0 0.0
        %657 = vmatprep.subr.mxu0 0.0
        %658 = vmatpush1.xpose.msra.mxu0 0.0
        %659 = vmatprep.subr.mxu0 0.0
        %660 = vmatpush1.xpose.msra.mxu0 0.0
        %661 = vmatprep.subr.mxu0 0.0
        %662 = vmatpush1.xpose.msra.mxu0 0.0
        %663 = vmatprep.subr.mxu0 0.0
        %664 = vmatpush1.xpose.msra.mxu0 0.0
        %665 = vmatprep.subr.mxu0 0.0
        %666 = vmatpush1.xpose.msra.mxu0 0.0
        %667 = vmatprep.subr.mxu0 0.0
        %668 = vmatpush1.xpose.msra.mxu0 0.0
        %669 = vmatprep.subr.mxu0 0.0
        %670 = vmatpush1.xpose.msra.mxu0 0.0
        %671 = vmatprep.subr.mxu0 0.0
        %672 = vmatpush1.xpose.msra.mxu0 0.0
        %673 = vmatprep.subr.mxu0 0.0
        %674 = vmatpush1.xpose.msra.mxu0 0.0
        %675 = vmatprep.subr.mxu0 0.0
        %676 = vmatpush1.xpose.msra.mxu0 0.0
        %677 = vmatprep.subr.mxu0 0.0
        %678 = vmatpush1.xpose.msra.mxu0 0.0
        %679 = vmatprep.subr.mxu0 0.0
        %680 = vmatpush1.xpose.msra.mxu0 0.0
        %681 = vmatprep.subr.mxu0 0.0
        %682 = vmatpush1.xpose.msra.mxu0 0.0
        %683 = vmatprep.subr.mxu0 0.0
        %684 = vmatpush1.xpose.msra.mxu0 0.0
        %685 = vmatprep.subr.mxu0 0.0
        %686 = vmatpush1.xpose.msra.mxu0 0.0
        %687 = vmatprep.subr.mxu0 0.0
        %688 = vmatpush1.xpose.msra.mxu0 0.0
        %689 = vmatprep.subr.mxu0 0.0
        %690 = vmatpush1.xpose.msra.mxu0 0.0
        %691 = vmatprep.mubr.f32.mxu0 0.0
        %692 = vmatmul.mubr.f32.gmra.mrb[0].mxu0 %v622
        %v693 = vpop.f32.mrb[0].mxu0
        %v694 = vadd.f32 0.0, %v693
        %v695 = vpop.f32.mrb[0].mxu0
        %696 = vmatprep.mubr.f32.mxu0 0.0
        %697 = vmatmul.mubr.f32.gmra.mrb[0].mxu0 %v625
        %v698 = vpop.f32.mrb[0].mxu0
        %v699 = vadd.f32 0.0, %v698
        %v700 = vpop.f32.mrb[0].mxu0
        %701 = vdwg.mxu0
        %v702 = vmul.f32 %v451, 0.044194173
        %v703 = vmul.f32 %v456, 0.044194173
        %v704 = vmul.f32 %v532, 0.044194173
        %v705 = vmul.f32 %v537, 0.044194173
        %v706 = vmul.f32 %v613, 0.044194173
        %v707 = vmul.f32 %v618, 0.044194173
        %v708 = vmul.f32 %v694, 0.044194173
        %v709 = vmul.f32 %v699, 0.044194173
        %vm710 = vcmask 130048
        %v711 = vsel %vm710, %v702, -inf
        %712 = vmax.xlane.f32.xlu0 %v711
        %v713 = vpop.xlane.xlu0 %712
        %v714 = vsel %vm710, %v703, -inf
        %715 = vmax.xlane.f32.xlu0 %v714
        %v716 = vpop.xlane.xlu0 %715
        %v717 = vsel %vm710, %v704, -inf
        %718 = vmax.xlane.f32.xlu0 %v717
        %v719 = vpop.xlane.xlu0 %718
        %v720 = vsel %vm710, %v705, -inf
        %721 = vmax.xlane.f32.xlu0 %v720
        %v722 = vpop.xlane.xlu0 %721
        %v723 = vsel %vm710, %v706, -inf
        %724 = vmax.xlane.f32.xlu0 %v723
        %v725 = vpop.xlane.xlu0 %724
        %v726 = vsel %vm710, %v707, -inf
        %727 = vmax.xlane.f32.xlu0 %v726
        %v728 = vpop.xlane.xlu0 %727
        %v729 = vsel %vm710, %v708, -inf
        %730 = vmax.xlane.f32.xlu0 %v729
        %v731 = vpop.xlane.xlu0 %730
        %v732 = vsel %vm710, %v709, -inf
        %733 = vmax.xlane.f32.xlu0 %v732
        %v734 = vpop.xlane.xlu0 %733
        %v735 = vsub.f32 %v702, %v713
        %v736 = vsub.f32 %v703, %v716
        %v737 = vsub.f32 %v704, %v719
        %v738 = vsub.f32 %v705, %v722
        %v739 = vsub.f32 %v706, %v725
        %v740 = vsub.f32 %v707, %v728
        %v741 = vsub.f32 %v708, %v731
        %v742 = vsub.f32 %v709, %v734
        %v743 = vmul.f32 %v735, 1.442695
        %v744 = vpow.pop %v743
        %v745 = vmul.f32 %v736, 1.442695
        %v746 = vpow.pop %v745
        %v747 = vmul.f32 %v737, 1.442695
        %v748 = vpow.pop %v747
        %v749 = vmul.f32 %v738, 1.442695
        %v750 = vpow.pop %v749
        %v751 = vmul.f32 %v739, 1.442695
        %v752 = vpow.pop %v751
        %v753 = vmul.f32 %v740, 1.442695
        %v754 = vpow.pop %v753
        %v755 = vmul.f32 %v741, 1.442695
        %v756 = vpow.pop %v755
        %v757 = vmul.f32 %v742, 1.442695
        %v758 = vpow.pop %v757
        %v759 = vsel %vm710, %v744, 0.0
        %760 = vadd.xlane.f32.xlu0 %v759
        %v761 = vpop.xlane.xlu0 %760
        %v762 = vsel %vm710, %v746, 0.0
        %763 = vadd.xlane.f32.xlu0 %v762
        %v764 = vpop.xlane.xlu0 %763
        %v765 = vsel %vm710, %v748, 0.0
        %766 = vadd.xlane.f32.xlu0 %v765
        %v767 = vpop.xlane.xlu0 %766
        %v768 = vsel %vm710, %v750, 0.0
        %769 = vadd.xlane.f32.xlu0 %v768
        %v770 = vpop.xlane.xlu0 %769
        %v771 = vsel %vm710, %v752, 0.0
        %772 = vadd.xlane.f32.xlu0 %v771
        %v773 = vpop.xlane.xlu0 %772
        %v774 = vsel %vm710, %v754, 0.0
        %775 = vadd.xlane.f32.xlu0 %v774
        %v776 = vpop.xlane.xlu0 %775
        %v777 = vsel %vm710, %v756, 0.0
        %778 = vadd.xlane.f32.xlu0 %v777
        %v779 = vpop.xlane.xlu0 %778
        %v780 = vsel %vm710, %v758, 0.0
        %781 = vadd.xlane.f32.xlu0 %v780
        %v782 = vpop.xlane.xlu0 %781
        %v783 = vrcp.pop %v761
        %v784 = vmul.f32 %v744, %v783
        %v785 = vrcp.pop %v764
        %v786 = vmul.f32 %v746, %v785
        %v787 = vrcp.pop %v767
        %v788 = vmul.f32 %v748, %v787
        %v789 = vrcp.pop %v770
        %v790 = vmul.f32 %v750, %v789
        %v791 = vrcp.pop %v773
        %v792 = vmul.f32 %v752, %v791
        %v793 = vrcp.pop %v776
        %v794 = vmul.f32 %v754, %v793
        %v795 = vrcp.pop %v779
        %v796 = vmul.f32 %v756, %v795
        %v797 = vrcp.pop %v782
        %v798 = vmul.f32 %v758, %v797
        %799 = vrot.lane.b32.xlu0 %v340, 96
        %v800 = vpop.permute.xlu0 %799
        %801 = vrot.lane.b32.xlu0 %v345, 96
        %v802 = vpop.permute.xlu0 %801
        %v806 = vsel %vm710, %v784, 0
        %v809 = vsel %vm710, %v786, 0
        %811 = vmatprep.subr.mxu0 0.0
        %812 = vmatpush1.msra.mxu0 %v800
        %813 = vmatprep.subr.mxu0 0.0
        %814 = vmatpush1.msra.mxu0 %v802
        %815 = vmatprep.subr.mxu0 0.0
        %816 = vmatpush1.msra.mxu0 0.0
        %817 = vmatprep.subr.mxu0 0.0
        %818 = vmatpush1.msra.mxu0 0.0
        %819 = vmatprep.subr.mxu0 0.0
        %820 = vmatpush1.msra.mxu0 0.0
        %821 = vmatprep.subr.mxu0 0.0
        %822 = vmatpush1.msra.mxu0 0.0
        %823 = vmatprep.subr.mxu0 0.0
        %824 = vmatpush1.msra.mxu0 0.0
        %825 = vmatprep.subr.mxu0 0.0
        %826 = vmatpush1.msra.mxu0 0.0
        %827 = vmatprep.subr.mxu0 0.0
        %828 = vmatpush1.msra.mxu0 0.0
        %829 = vmatprep.subr.mxu0 0.0
        %830 = vmatpush1.msra.mxu0 0.0
        %831 = vmatprep.subr.mxu0 0.0
        %832 = vmatpush1.msra.mxu0 0.0
        %833 = vmatprep.subr.mxu0 0.0
        %834 = vmatpush1.msra.mxu0 0.0
        %835 = vmatprep.subr.mxu0 0.0
        %836 = vmatpush1.msra.mxu0 0.0
        %837 = vmatprep.subr.mxu0 0.0
        %838 = vmatpush1.msra.mxu0 0.0
        %839 = vmatprep.subr.mxu0 0.0
        %840 = vmatpush1.msra.mxu0 0.0
        %841 = vmatprep.subr.mxu0 0.0
        %842 = vmatpush1.msra.mxu0 0.0
        %843 = vmatprep.subr.mxu0 0.0
        %844 = vmatpush1.msra.mxu0 0.0
        %845 = vmatprep.subr.mxu0 0.0
        %846 = vmatpush1.msra.mxu0 0.0
        %847 = vmatprep.subr.mxu0 0.0
        %848 = vmatpush1.msra.mxu0 0.0
        %849 = vmatprep.subr.mxu0 0.0
        %850 = vmatpush1.msra.mxu0 0.0
        %851 = vmatprep.subr.mxu0 0.0
        %852 = vmatpush1.msra.mxu0 0.0
        %853 = vmatprep.subr.mxu0 0.0
        %854 = vmatpush1.msra.mxu0 0.0
        %855 = vmatprep.subr.mxu0 0.0
        %856 = vmatpush1.msra.mxu0 0.0
        %857 = vmatprep.subr.mxu0 0.0
        %858 = vmatpush1.msra.mxu0 0.0
        %859 = vmatprep.subr.mxu0 0.0
        %860 = vmatpush1.msra.mxu0 0.0
        %861 = vmatprep.subr.mxu0 0.0
        %862 = vmatpush1.msra.mxu0 0.0
        %863 = vmatprep.subr.mxu0 0.0
        %864 = vmatpush1.msra.mxu0 0.0
        %865 = vmatprep.subr.mxu0 0.0
        %866 = vmatpush1.msra.mxu0 0.0
        %867 = vmatprep.subr.mxu0 0.0
        %868 = vmatpush1.msra.mxu0 0.0
        %869 = vmatprep.subr.mxu0 0.0
        %870 = vmatpush1.msra.mxu0 0.0
        %871 = vmatprep.subr.mxu0 0.0
        %872 = vmatpush1.msra.mxu0 0.0
        %873 = vmatprep.subr.mxu0 0.0
        %874 = vmatpush1.msra.mxu0 0.0
        %875 = vmatprep.mubr.f32.mxu0 0.0
        %876 = vmatmul.mubr.f32.gmra.mrb[0].mxu0 %v806
        %v877 = vpop.f32.mrb[0].mxu0
        %v878 = vadd.f32 0.0, %v877
        %v879 = vpop.f32.mrb[0].mxu0
        %880 = vmatprep.mubr.f32.mxu0 0.0
        %881 = vmatmul.mubr.f32.gmra.mrb[0].mxu0 %v809
        %v882 = vpop.f32.mrb[0].mxu0
        %v883 = vadd.f32 0.0, %v882
        %v884 = vpop.f32.mrb[0].mxu0
        %885 = vdwg.mxu0
        %886 = vrot.lane.b32.xlu0 %v350, 96
        %v887 = vpop.permute.xlu0 %886
        %888 = vrot.lane.b32.xlu0 %v355, 96
        %v889 = vpop.permute.xlu0 %888
        %v893 = vsel %vm710, %v788, 0
        %v896 = vsel %vm710, %v790, 0
        %898 = vmatprep.subr.mxu0 0.0
        %899 = vmatpush1.msra.mxu0 %v887
        %900 = vmatprep.subr.mxu0 0.0
        %901 = vmatpush1.msra.mxu0 %v889
        %902 = vmatprep.subr.mxu0 0.0
        %903 = vmatpush1.msra.mxu0 0.0
        %904 = vmatprep.subr.mxu0 0.0
        %905 = vmatpush1.msra.mxu0 0.0
        %906 = vmatprep.subr.mxu0 0.0
        %907 = vmatpush1.msra.mxu0 0.0
        %908 = vmatprep.subr.mxu0 0.0
        %909 = vmatpush1.msra.mxu0 0.0
        %910 = vmatprep.subr.mxu0 0.0
        %911 = vmatpush1.msra.mxu0 0.0
        %912 = vmatprep.subr.mxu0 0.0
        %913 = vmatpush1.msra.mxu0 0.0
        %914 = vmatprep.subr.mxu0 0.0
        %915 = vmatpush1.msra.mxu0 0.0
        %916 = vmatprep.subr.mxu0 0.0
        %917 = vmatpush1.msra.mxu0 0.0
        %918 = vmatprep.subr.mxu0 0.0
        %919 = vmatpush1.msra.mxu0 0.0
        %920 = vmatprep.subr.mxu0 0.0
        %921 = vmatpush1.msra.mxu0 0.0
        %922 = vmatprep.subr.mxu0 0.0
        %923 = vmatpush1.msra.mxu0 0.0
        %924 = vmatprep.subr.mxu0 0.0
        %925 = vmatpush1.msra.mxu0 0.0
        %926 = vmatprep.subr.mxu0 0.0
        %927 = vmatpush1.msra.mxu0 0.0
        %928 = vmatprep.subr.mxu0 0.0
        %929 = vmatpush1.msra.mxu0 0.0
        %930 = vmatprep.subr.mxu0 0.0
        %931 = vmatpush1.msra.mxu0 0.0
        %932 = vmatprep.subr.mxu0 0.0
        %933 = vmatpush1.msra.mxu0 0.0
        %934 = vmatprep.subr.mxu0 0.0
        %935 = vmatpush1.msra.mxu0 0.0
        %936 = vmatprep.subr.mxu0 0.0
        %937 = vmatpush1.msra.mxu0 0.0
        %938 = vmatprep.subr.mxu0 0.0
        %939 = vmatpush1.msra.mxu0 0.0
        %940 = vmatprep.subr.mxu0 0.0
        %941 = vmatpush1.msra.mxu0 0.0
        %942 = vmatprep.subr.mxu0 0.0
        %943 = vmatpush1.msra.mxu0 0.0
        %944 = vmatprep.subr.mxu0 0.0
        %945 = vmatpush1.msra.mxu0 0.0
        %946 = vmatprep.subr.mxu0 0.0
        %947 = vmatpush1.msra.mxu0 0.0
        %948 = vmatprep.subr.mxu0 0.0
        %949 = vmatpush1.msra.mxu0 0.0
        %950 = vmatprep.subr.mxu0 0.0
        %951 = vmatpush1.msra.mxu0 0.0
        %952 = vmatprep.subr.mxu0 0.0
        %953 = vmatpush1.msra.mxu0 0.0
        %954 = vmatprep.subr.mxu0 0.0
        %955 = vmatpush1.msra.mxu0 0.0
        %956 = vmatprep.subr.mxu0 0.0
        %957 = vmatpush1.msra.mxu0 0.0
        %958 = vmatprep.subr.mxu0 0.0
        %959 = vmatpush1.msra.mxu0 0.0
        %960 = vmatprep.subr.mxu0 0.0
        %961 = vmatpush1.msra.mxu0 0.0
        %962 = vmatprep.mubr.f32.mxu0 0.0
        %963 = vmatmul.mubr.f32.gmra.mrb[0].mxu0 %v893
        %v964 = vpop.f32.mrb[0].mxu0
        %v965 = vadd.f32 0.0, %v964
        %v966 = vpop.f32.mrb[0].mxu0
        %967 = vmatprep.mubr.f32.mxu0 0.0
        %968 = vmatmul.mubr.f32.gmra.mrb[0].mxu0 %v896
        %v969 = vpop.f32.mrb[0].mxu0
        %v970 = vadd.f32 0.0, %v969
        %v971 = vpop.f32.mrb[0].mxu0
        %972 = vdwg.mxu0
        %973 = vrot.lane.b32.xlu0 %v360, 96
        %v974 = vpop.permute.xlu0 %973
        %975 = vrot.lane.b32.xlu0 %v365, 96
        %v976 = vpop.permute.xlu0 %975
        %v980 = vsel %vm710, %v792, 0
        %v983 = vsel %vm710, %v794, 0
        %985 = vmatprep.subr.mxu0 0.0
        %986 = vmatpush1.msra.mxu0 %v974
        %987 = vmatprep.subr.mxu0 0.0
        %988 = vmatpush1.msra.mxu0 %v976
        %989 = vmatprep.subr.mxu0 0.0
        %990 = vmatpush1.msra.mxu0 0.0
        %991 = vmatprep.subr.mxu0 0.0
        %992 = vmatpush1.msra.mxu0 0.0
        %993 = vmatprep.subr.mxu0 0.0
        %994 = vmatpush1.msra.mxu0 0.0
        %995 = vmatprep.subr.mxu0 0.0
        %996 = vmatpush1.msra.mxu0 0.0
        %997 = vmatprep.subr.mxu0 0.0
        %998 = vmatpush1.msra.mxu0 0.0
        %999 = vmatprep.subr.mxu0 0.0
        %1000 = vmatpush1.msra.mxu0 0.0
        %1001 = vmatprep.subr.mxu0 0.0
        %1002 = vmatpush1.msra.mxu0 0.0
        %1003 = vmatprep.subr.mxu0 0.0
        %1004 = vmatpush1.msra.mxu0 0.0
        %1005 = vmatprep.subr.mxu0 0.0
        %1006 = vmatpush1.msra.mxu0 0.0
        %1007 = vmatprep.subr.mxu0 0.0
        %1008 = vmatpush1.msra.mxu0 0.0
        %1009 = vmatprep.subr.mxu0 0.0
        %1010 = vmatpush1.msra.mxu0 0.0
        %1011 = vmatprep.subr.mxu0 0.0
        %1012 = vmatpush1.msra.mxu0 0.0
        %1013 = vmatprep.subr.mxu0 0.0
        %1014 = vmatpush1.msra.mxu0 0.0
        %1015 = vmatprep.subr.mxu0 0.0
        %1016 = vmatpush1.msra.mxu0 0.0
        %1017 = vmatprep.subr.mxu0 0.0
        %1018 = vmatpush1.msra.mxu0 0.0
        %1019 = vmatprep.subr.mxu0 0.0
        %1020 = vmatpush1.msra.mxu0 0.0
        %1021 = vmatprep.subr.mxu0 0.0
        %1022 = vmatpush1.msra.mxu0 0.0
        %1023 = vmatprep.subr.mxu0 0.0
        %1024 = vmatpush1.msra.mxu0 0.0
        %1025 = vmatprep.subr.mxu0 0.0
        %1026 = vmatpush1.msra.mxu0 0.0
        %1027 = vmatprep.subr.mxu0 0.0
        %1028 = vmatpush1.msra.mxu0 0.0
        %1029 = vmatprep.subr.mxu0 0.0
        %1030 = vmatpush1.msra.mxu0 0.0
        %1031 = vmatprep.subr.mxu0 0.0
        %1032 = vmatpush1.msra.mxu0 0.0
        %1033 = vmatprep.subr.mxu0 0.0
        %1034 = vmatpush1.msra.mxu0 0.0
        %1035 = vmatprep.subr.mxu0 0.0
        %1036 = vmatpush1.msra.mxu0 0.0
        %1037 = vmatprep.subr.mxu0 0.0
        %1038 = vmatpush1.msra.mxu0 0.0
        %1039 = vmatprep.subr.mxu0 0.0
        %1040 = vmatpush1.msra.mxu0 0.0
        %1041 = vmatprep.subr.mxu0 0.0
        %1042 = vmatpush1.msra.mxu0 0.0
        %1043 = vmatprep.subr.mxu0 0.0
        %1044 = vmatpush1.msra.mxu0 0.0
        %1045 = vmatprep.subr.mxu0 0.0
        %1046 = vmatpush1.msra.mxu0 0.0
        %1047 = vmatprep.subr.mxu0 0.0
        %1048 = vmatpush1.msra.mxu0 0.0
        %1049 = vmatprep.mubr.f32.mxu0 0.0
        %1050 = vmatmul.mubr.f32.gmra.mrb[0].mxu0 %v980
        %v1051 = vpop.f32.mrb[0].mxu0
        %v1052 = vadd.f32 0.0, %v1051
        %v1053 = vpop.f32.mrb[0].mxu0
        %1054 = vmatprep.mubr.f32.mxu0 0.0
        %1055 = vmatmul.mubr.f32.gmra.mrb[0].mxu0 %v983
        %v1056 = vpop.f32.mrb[0].mxu0
        %v1057 = vadd.f32 0.0, %v1056
        %v1058 = vpop.f32.mrb[0].mxu0
        %1059 = vdwg.mxu0
        %1060 = vrot.lane.b32.xlu0 %v370, 96
        %v1061 = vpop.permute.xlu0 %1060
        %1062 = vrot.lane.b32.xlu0 %v375, 96
        %v1063 = vpop.permute.xlu0 %1062
        %v1067 = vsel %vm710, %v796, 0
        %v1070 = vsel %vm710, %v798, 0
        %1072 = vmatprep.subr.mxu0 0.0
        %1073 = vmatpush1.msra.mxu0 %v1061
        %1074 = vmatprep.subr.mxu0 0.0
        %1075 = vmatpush1.msra.mxu0 %v1063
        %1076 = vmatprep.subr.mxu0 0.0
        %1077 = vmatpush1.msra.mxu0 0.0
        %1078 = vmatprep.subr.mxu0 0.0
        %1079 = vmatpush1.msra.mxu0 0.0
        %1080 = vmatprep.subr.mxu0 0.0
        %1081 = vmatpush1.msra.mxu0 0.0
        %1082 = vmatprep.subr.mxu0 0.0
        %1083 = vmatpush1.msra.mxu0 0.0
        %1084 = vmatprep.subr.mxu0 0.0
        %1085 = vmatpush1.msra.mxu0 0.0
        %1086 = vmatprep.subr.mxu0 0.0
        %1087 = vmatpush1.msra.mxu0 0.0
        %1088 = vmatprep.subr.mxu0 0.0
        %1089 = vmatpush1.msra.mxu0 0.0
        %1090 = vmatprep.subr.mxu0 0.0
        %1091 = vmatpush1.msra.mxu0 0.0
        %1092 = vmatprep.subr.mxu0 0.0
        %1093 = vmatpush1.msra.mxu0 0.0
        %1094 = vmatprep.subr.mxu0 0.0
        %1095 = vmatpush1.msra.mxu0 0.0
        %1096 = vmatprep.subr.mxu0 0.0
        %1097 = vmatpush1.msra.mxu0 0.0
        %1098 = vmatprep.subr.mxu0 0.0
        %1099 = vmatpush1.msra.mxu0 0.0
        %1100 = vmatprep.subr.mxu0 0.0
        %1101 = vmatpush1.msra.mxu0 0.0
        %1102 = vmatprep.subr.mxu0 0.0
        %1103 = vmatpush1.msra.mxu0 0.0
        %1104 = vmatprep.subr.mxu0 0.0
        %1105 = vmatpush1.msra.mxu0 0.0
        %1106 = vmatprep.subr.mxu0 0.0
        %1107 = vmatpush1.msra.mxu0 0.0
        %1108 = vmatprep.subr.mxu0 0.0
        %1109 = vmatpush1.msra.mxu0 0.0
        %1110 = vmatprep.subr.mxu0 0.0
        %1111 = vmatpush1.msra.mxu0 0.0
        %1112 = vmatprep.subr.mxu0 0.0
        %1113 = vmatpush1.msra.mxu0 0.0
        %1114 = vmatprep.subr.mxu0 0.0
        %1115 = vmatpush1.msra.mxu0 0.0
        %1116 = vmatprep.subr.mxu0 0.0
        %1117 = vmatpush1.msra.mxu0 0.0
        %1118 = vmatprep.subr.mxu0 0.0
        %1119 = vmatpush1.msra.mxu0 0.0
        %1120 = vmatprep.subr.mxu0 0.0
        %1121 = vmatpush1.msra.mxu0 0.0
        %1122 = vmatprep.subr.mxu0 0.0
        %1123 = vmatpush1.msra.mxu0 0.0
        %1124 = vmatprep.subr.mxu0 0.0
        %1125 = vmatpush1.msra.mxu0 0.0
        %1126 = vmatprep.subr.mxu0 0.0
        %1127 = vmatpush1.msra.mxu0 0.0
        %1128 = vmatprep.subr.mxu0 0.0
        %1129 = vmatpush1.msra.mxu0 0.0
        %1130 = vmatprep.subr.mxu0 0.0
        %1131 = vmatpush1.msra.mxu0 0.0
        %1132 = vmatprep.subr.mxu0 0.0
        %1133 = vmatpush1.msra.mxu0 0.0
        %1134 = vmatprep.subr.mxu0 0.0
        %1135 = vmatpush1.msra.mxu0 0.0
        %1136 = vmatprep.mubr.f32.mxu0 0.0
        %1137 = vmatmul.mubr.f32.gmra.mrb[0].mxu0 %v1067
        %v1138 = vpop.f32.mrb[0].mxu0
        %v1139 = vadd.f32 0.0, %v1138
        %v1140 = vpop.f32.mrb[0].mxu0
        %1141 = vmatprep.mubr.f32.mxu0 0.0
        %1142 = vmatmul.mubr.f32.gmra.mrb[0].mxu0 %v1070
        %v1143 = vpop.f32.mrb[0].mxu0
        %v1144 = vadd.f32 0.0, %v1143
        %v1145 = vpop.f32.mrb[0].mxu0
        %1146 = vdwg.mxu0
        %v1147 = vsel %vm248, %v878, 0.0
        %v1148 = vsel %vm248, %v965, 0.0
        %v1149 = vadd.f32 %v1147, %v1148
        %v1150 = vsel %vm248, %v883, 0.0
        %v1151 = vsel %vm248, %v970, 0.0
        %v1152 = vadd.f32 %v1150, %v1151
        %v1153 = vsel %vm248, %v1052, 0.0
        %v1154 = vsel %vm248, %v1139, 0.0
        %v1155 = vadd.f32 %v1153, %v1154
        %v1156 = vsel %vm248, %v1057, 0.0
        %v1157 = vsel %vm248, %v1144, 0.0
        %v1158 = vadd.f32 %v1156, %v1157
        %v1159 = vsel %vm248, %v236, 0.0
        %v1160 = vsel %vm248, %v238, 0.0
        %v1161 = vadd.f32 %v1159, %v1160
        %v1162 = vsel %vm248, %v237, 0.0
        %v1163 = vsel %vm248, %v239, 0.0
        %v1164 = vadd.f32 %v1162, %v1163
        %v1165 = vsel %vm248, %v240, 0.0
        %v1166 = vsel %vm248, %v242, 0.0
        %v1167 = vadd.f32 %v1165, %v1166
        %v1168 = vsel %vm248, %v241, 0.0
        %v1169 = vsel %vm248, %v243, 0.0
        %v1170 = vadd.f32 %v1168, %v1169
        %v1171 = vld [vmem:[%s2] sm:$0xff]
        %v1172 = vld [vmem:[%s2 + $0x8] sm:$0xff]
        %v1173 = vld [vmem:[%s2 + $0x10] sm:$0xff]
        %v1174 = vld [vmem:[%s2 + $0x18] sm:$0xff]
        %v1176 = vsel %vm248, %v1149, 0
        %v1179 = vsel %vm248, %v1152, 0
        %v1182 = vsel %vm248, %v1155, 0
        %v1185 = vsel %vm248, %v1158, 0
        %1187 = vmatprep.subr.mxu0 0.0
        %1188 = vmatpush1.msra.mxu0 %v1171
        %1189 = vmatprep.subr.mxu0 0.0
        %1190 = vmatpush1.msra.mxu0 %v1172
        %1191 = vmatprep.subr.mxu0 0.0
        %1192 = vmatpush1.msra.mxu0 %v1173
        %1193 = vmatprep.subr.mxu0 0.0
        %1194 = vmatpush1.msra.mxu0 %v1174
        %1195 = vmatprep.subr.mxu0 0.0
        %1196 = vmatpush1.msra.mxu0 0.0
        %1197 = vmatprep.subr.mxu0 0.0
        %1198 = vmatpush1.msra.mxu0 0.0
        %1199 = vmatprep.subr.mxu0 0.0
        %1200 = vmatpush1.msra.mxu0 0.0
        %1201 = vmatprep.subr.mxu0 0.0
        %1202 = vmatpush1.msra.mxu0 0.0
        %1203 = vmatprep.subr.mxu0 0.0
        %1204 = vmatpush1.msra.mxu0 0.0
        %1205 = vmatprep.subr.mxu0 0.0
        %1206 = vmatpush1.msra.mxu0 0.0
        %1207 = vmatprep.subr.mxu0 0.0
        %1208 = vmatpush1.msra.mxu0 0.0
        %1209 = vmatprep.subr.mxu0 0.0
        %1210 = vmatpush1.msra.mxu0 0.0
        %1211 = vmatprep.subr.mxu0 0.0
        %1212 = vmatpush1.msra.mxu0 0.0
        %1213 = vmatprep.subr.mxu0 0.0
        %1214 = vmatpush1.msra.mxu0 0.0
        %1215 = vmatprep.subr.mxu0 0.0
        %1216 = vmatpush1.msra.mxu0 0.0
        %1217 = vmatprep.subr.mxu0 0.0
        %1218 = vmatpush1.msra.mxu0 0.0
        %1219 = vmatprep.subr.mxu0 0.0
        %1220 = vmatpush1.msra.mxu0 0.0
        %1221 = vmatprep.subr.mxu0 0.0
        %1222 = vmatpush1.msra.mxu0 0.0
        %1223 = vmatprep.subr.mxu0 0.0
        %1224 = vmatpush1.msra.mxu0 0.0
        %1225 = vmatprep.subr.mxu0 0.0
        %1226 = vmatpush1.msra.mxu0 0.0
        %1227 = vmatprep.subr.mxu0 0.0
        %1228 = vmatpush1.msra.mxu0 0.0
        %1229 = vmatprep.subr.mxu0 0.0
        %1230 = vmatpush1.msra.mxu0 0.0
        %1231 = vmatprep.subr.mxu0 0.0
        %1232 = vmatpush1.msra.mxu0 0.0
        %1233 = vmatprep.subr.mxu0 0.0
        %1234 = vmatpush1.msra.mxu0 0.0
        %1235 = vmatprep.subr.mxu0 0.0
        %1236 = vmatpush1.msra.mxu0 0.0
        %1237 = vmatprep.subr.mxu0 0.0
        %1238 = vmatpush1.msra.mxu0 0.0
        %1239 = vmatprep.subr.mxu0 0.0
        %1240 = vmatpush1.msra.mxu0 0.0
        %1241 = vmatprep.subr.mxu0 0.0
        %1242 = vmatpush1.msra.mxu0 0.0
        %1243 = vmatprep.subr.mxu0 0.0
        %1244 = vmatpush1.msra.mxu0 0.0
        %1245 = vmatprep.subr.mxu0 0.0
        %1246 = vmatpush1.msra.mxu0 0.0
        %1247 = vmatprep.subr.mxu0 0.0
        %1248 = vmatpush1.msra.mxu0 0.0
        %1249 = vmatprep.subr.mxu0 0.0
        %1250 = vmatpush1.msra.mxu0 0.0
        %1251 = vmatprep.mubr.f32.mxu0 0.0
        %1252 = vmatmul.mubr.f32.gmra.mrb[0].mxu0 %v1176
        %v1253 = vpop.f32.mrb[0].mxu0
        %v1254 = vadd.f32 0.0, %v1253
        %v1255 = vpop.f32.mrb[0].mxu0
        %1256 = vmatprep.mubr.f32.mxu0 0.0
        %1257 = vmatmul.mubr.f32.gmra.mrb[0].mxu0 %v1179
        %v1258 = vpop.f32.mrb[0].mxu0
        %v1259 = vadd.f32 0.0, %v1258
        %v1260 = vpop.f32.mrb[0].mxu0
        %1261 = vmatprep.mubr.f32.mxu0 0.0
        %1262 = vmatmul.mubr.f32.gmra.mrb[0].mxu0 %v1182
        %v1263 = vpop.f32.mrb[0].mxu0
        %v1264 = vadd.f32 0.0, %v1263
        %v1265 = vpop.f32.mrb[0].mxu0
        %1266 = vmatprep.mubr.f32.mxu0 0.0
        %1267 = vmatmul.mubr.f32.gmra.mrb[0].mxu0 %v1185
        %v1268 = vpop.f32.mrb[0].mxu0
        %v1269 = vadd.f32 0.0, %v1268
        %v1270 = vpop.f32.mrb[0].mxu0
        %1271 = vdwg.mxu0
        %v1272 = vadd.f32 %v1254, %v1161
        %v1273 = vadd.f32 %v1259, %v1164
        %v1274 = vadd.f32 %v1264, %v1167
        %v1275 = vadd.f32 %v1269, %v1170
        %1276 = vst.msk [vmem:[%s235] sm:$0xff] %vm248, %v1272
        %1277 = vst.msk [vmem:[%s235 + $0x8] sm:$0xff] %vm248, %v1273
        %1278 = vst.msk [vmem:[%s235 + $0x10] sm:$0xff] %vm248, %v1274
        %1279 = vst.msk [vmem:[%s235 + $0x18] sm:$0xff] %vm248, %v1275
        %p1280 = scmp.lt.s32.totalorder %s14, 1
        %s1281 = scalar_select %p1280, %s14, 1
        %s1282 = smul.addr %s1281, 4
        %s1283 = smul.addr %s1282, 8
        %s1284 = scalar_lea.vmem %s3, %s1283
        // Predicated region
        $region71: #{irl_forward.1} parent=65 // pred_check
          %p1285 = pneg %p100
        $region72: #{irl_forward.1} parent=65 // pred_check_branch
          %1287 = sbr.rel (%p1285) target = $region74
        $region73: #{irl_forward.1} parent=65 // pred_region
          _
        $region74: #{irl_forward.1} parent=65 // pred_fallthru
          _
      $region66: #{irl_forward.1} parent=5 // pred_fallthru
        _
      %p1288 = scmp.le.s32.totalorder 2, %s9
      // Predicated region
      $region75: #{irl_forward.1} parent=5 // pred_check
        %p1289 = pneg %p1288
      $region76: #{irl_forward.1} parent=5 // pred_check_branch
        %1291 = sbr.rel (%p1289) target = $region78
      $region77: #{irl_forward.1} parent=5 // pred_region
        %s1292 = ssub.s32 %s9, 2
        // Predicated region
        $region79: #{irl_forward.1} parent=77 // pred_check
          %p1293 = pneg %p106
        $region80: #{irl_forward.1} parent=77 // pred_check_branch
          %1295 = sbr.rel (%p1293) target = $region82
        $region81: #{irl_forward.1} parent=77 // pred_region
          %p1296 = scmp.lt.s32.totalorder %s15, 1
          %s1297 = scalar_select %p1296, %s15, 1
          %s1298 = smul.addr %s1297, 4
          %s1299 = smul.addr %s1298, 8
          %s1300 = scalar_lea.vmem %s3, %s1299
        $region82: #{irl_forward.1} parent=77 // pred_fallthru
          _
      $region78: #{irl_forward.1} parent=5 // pred_fallthru
        _
    $region6: #{irl_forward.1} parent=1 // loop_footer
      %s13 = sadd.s32 1, %s9
    $region7: #{irl_forward.1} parent=1 // loop_footer_branch
      %8 = sbr.rel target = $region3
    $region8: #{irl_forward.1} parent=1 // loop_exit
      _

</llo_original>
